<compile_context>
chip_gen: v5e
topology: v5e:2x2
jax: 0.10.0
libtpu: 0.0.40
codegen_flags: <defaults>
</compile_context>

<pallas_src>
import functools
import math

import jax
import jax.numpy as jnp
from jax.experimental import pallas as pl
from jax.experimental.pallas import tpu as pltpu


def _round_width(width, multiplier, min_width=8, divisor=8):
    width *= multiplier
    min_width = min_width or divisor
    width_out = max(min_width, int(width + divisor / 2) // divisor * divisor)
    if width_out < 0.9 * width:
        width_out += divisor
    return int(width_out)


# -----------------------------------------------------------------------------
# Hardware-aware sizing helpers
# -----------------------------------------------------------------------------

def _tpu_vmem_capacity_bytes():
    """Physical VMEM per TensorCore; conservative fallback (v7x = 64 MiB)."""
    try:
        return int(pltpu.get_tpu_info().vmem_capacity_bytes)
    except Exception:  # attribute/backend differences -> be conservative
        return 64 << 20


def _vmem_limit(need_bytes, cap_bytes):
    """vmem_limit_bytes with generous headroom, kept below physical capacity."""
    return int(min(int(cap_bytes * 0.9), max(2 * need_bytes, 32 << 20)))


def _fused_vmem_need(nb, c, s, xbytes):
    blk = nb * c * s * xbytes
    f32_tmp = nb * c * s * 4            # worst case cast temp (bf16 inputs)
    return 4 * blk + f32_tmp + (1 << 20)  # in + out double-buffered + margin


def _pick_fused_nb(n, c, s, xbytes, target_step_bytes, budget):
    """Samples per block for the fused path (divisor of N, bounded block size)."""
    slab = c * s * xbytes
    best = 1
    for nb in range(1, n + 1):
        if n % nb:
            continue
        if _fused_vmem_need(nb, c, s, xbytes) > budget:
            continue
        if nb * slab > max(4 * target_step_bytes, slab):
            continue
        best = nb
    return best


def _pick_tile_s(s, c, xbytes, target_step_bytes, budget):
    """Pick a lane-friendly S tile for the two-pass path.

    Returns (tS, S_pad).  S_pad == S unless S is not a multiple of 128 AND a
    single full-S block would blow the VMEM budget; in that rare case we pad S
    (zero padding does not change the pooled mean since inv_s stays 1/S).
    """
    per_elem = c * xbytes
    # pass 2 double-buffers both the x tile and the out tile: ~4 copies live.
    vmem_upper = (budget - (1 << 20)) // (4 * per_elem)
    target = max(128, target_step_bytes // per_elem)
    upper = max(128, min(vmem_upper, target))
    if s % 128 == 0:
        cap = min(upper, s)
        best, d = 128, 128
        while d <= cap:
            if s % d == 0:
                best = d
            d += 128
        return best, s
    if s <= upper:
        return s, s  # full-extent (unaligned) block: allowed and fits VMEM
    # TODO(synk): padding costs one extra HBM copy of x; an in-kernel masked
    # ragged last tile would avoid it, but typical X3D shapes never hit this.
    ts = max(128, min((target // 128) * 128, (upper // 128) * 128))
    s_pad = ((s + ts - 1) // ts) * ts
    return ts, s_pad


# -----------------------------------------------------------------------------
# Kernels
# -----------------------------------------------------------------------------

def _fused_se_kernel(x_ref, w1_ref, b1_ref, w2t_ref, b2_ref, o_ref, *, inv_s):
    """Single-read/single-write SE: pool -> fc1 -> relu -> fc2 -> sigmoid -> scale.

    x_ref/o_ref blocks: (nb, C, S).  Weights are tiny full arrays in VMEM.
    """
    x = x_ref[...].astype(jnp.float32)                          # (nb, C, S)
    pooled = jnp.sum(x, axis=2, keepdims=True) * inv_s          # (nb, C, 1)
    # fc1 (1x1x1 conv): h[n, b] = relu(sum_c pooled[n, c] * w1[c, b] + b1[b])
    h = jnp.sum(w1_ref[...][None] * pooled, axis=1, keepdims=True) + b1_ref[...][None]
    h = jnp.maximum(h, 0.0)                                     # (nb, 1, B)
    # fc2: gate[n, c] = sigmoid(sum_b h[n, b] * w2[b, c] + b2[c]); w2t = w2.T
    logits = (jnp.sum(w2t_ref[...][None] * h, axis=2, keepdims=True)
              + b2_ref[...][None])                              # (nb, C, 1)
    gate = jax.nn.sigmoid(logits)
    o_ref[...] = (x * gate).astype(o_ref.dtype)


def _pool_gate_kernel(x_ref, w1_ref, b1_ref, w2t_ref, b2_ref, gate_ref, acc_ref,
                      *, inv_s):
    """Two-pass path, pass 1: accumulate per-channel sums; finalize the gate.

    x_ref block: (C, tS) (sample dim squeezed).  acc_ref is (C, 128) when the
    tile is lane-dense and small enough for an unrolled chunk loop, else (C, 1).
    """
    si = pl.program_id(1)
    ts = x_ref.shape[1]
    lane_dense = acc_ref.shape[1] == 128

    @pl.when(si == 0)
    def _():
        acc_ref[...] = jnp.zeros_like(acc_ref)

    if lane_dense:
        # Pure-VPU accumulation into a lane-dense (C, 128) scratch: no per-step
        # cross-lane (XLU) reduce and no 1-lane masked store in steady state.
        n_chunks = ts // 128
        total = x_ref[:, 0:128].astype(jnp.float32)
        for j in range(1, n_chunks):
            total = total + x_ref[:, j * 128:(j + 1) * 128].astype(jnp.float32)
        acc_ref[...] += total
    else:
        acc_ref[...] += jnp.sum(x_ref[...].astype(jnp.float32), axis=1,
                                keepdims=True)

    @pl.when(si == pl.num_programs(1) - 1)
    def _():
        if lane_dense:
            pooled = jnp.sum(acc_ref[...], axis=1, keepdims=True) * inv_s  # (C,1)
        else:
            pooled = acc_ref[...] * inv_s                                  # (C,1)
        h = jnp.sum(w1_ref[...] * pooled, axis=0, keepdims=True) + b1_ref[...]
        h = jnp.maximum(h, 0.0)                                            # (1,B)
        logits = jnp.sum(w2t_ref[...] * h, axis=1, keepdims=True) + b2_ref[...]
        gate_ref[...] = jax.nn.sigmoid(logits).astype(gate_ref.dtype)      # (C,1)


def _scale_kernel(x_ref, gate_ref, o_ref):
    """Two-pass path, pass 2: out = x * gate (gate applied in f32)."""
    xf = x_ref[...].astype(jnp.float32)                 # (C, tS)
    o_ref[...] = (xf * gate_ref[...]).astype(o_ref.dtype)


# -----------------------------------------------------------------------------
# Wrapper
# -----------------------------------------------------------------------------

def se_module_forward(x_ncthw, w1, b1, w2, b2, *, target_step_bytes=2 << 20,
                      vmem_budget_bytes=None, force_two_pass=False,
                      donate_x=False):
    """x_ncthw: (N, C, T, H, W).  w1: (C, B), b1: (B,), w2: (B, C), b2: (C,)."""
    N, C, T, H, W = x_ncthw.shape
    S = T * H * W
    B = w1.shape[1]
    xbytes = jnp.dtype(x_ncthw.dtype).itemsize

    cap = _tpu_vmem_capacity_bytes()
    budget = vmem_budget_bytes if vmem_budget_bytes is not None else int(cap * 0.6)

    # Free reshape (no transpose): NCDHW -> (N, C, S); S sits on the lane axis.
    x_ncs = x_ncthw.reshape(N, C, S)

    # Tiny parameter re-layouts done once outside the kernels.
    w1f = jnp.asarray(w1, jnp.float32)                    # (C, B)
    b1_row = jnp.asarray(b1, jnp.float32).reshape(1, B)   # (1, B)
    w2t = jnp.asarray(w2, jnp.float32).T                  # (C, B)
    b2_col = jnp.asarray(b2, jnp.float32).reshape(C, 1)   # (C, 1)
    inv_s = 1.0 / float(S)

    alias = {0: 0} if donate_x else {}

    # ---------------- fused 1-read / 1-write path ----------------
    if (not force_two_pass) and _fused_vmem_need(1, C, S, xbytes) <= budget:
        nb = _pick_fused_nb(N, C, S, xbytes, target_step_bytes, budget)
        need = _fused_vmem_need(nb, C, S, xbytes)
        out_ncs = pl.pallas_call(
            functools.partial(_fused_se_kernel, inv_s=inv_s),
            out_shape=jax.ShapeDtypeStruct((N, C, S), x_ncs.dtype),
            grid_spec=pltpu.PrefetchScalarGridSpec(
                num_scalar_prefetch=0,
                grid=(N // nb,),
                in_specs=[
                    pl.BlockSpec((nb, C, S), lambda n: (n, 0, 0)),
                    pl.BlockSpec((C, B), lambda n: (0, 0)),
                    pl.BlockSpec((1, B), lambda n: (0, 0)),
                    pl.BlockSpec((C, B), lambda n: (0, 0)),
                    pl.BlockSpec((C, 1), lambda n: (0, 0)),
                ],
                out_specs=pl.BlockSpec((nb, C, S), lambda n: (n, 0, 0)),
            ),
            compiler_params=pltpu.CompilerParams(
                dimension_semantics=("parallel",),
                vmem_limit_bytes=_vmem_limit(need, cap)),
            input_output_aliases=alias,
        )(x_ncs, w1f, b1_row, w2t, b2_col)
        return out_ncs.reshape(N, C, T, H, W)

    # ---------------- two-pass streaming fallback ----------------
    tS, S_pad = _pick_tile_s(S, C, xbytes, target_step_bytes, budget)
    x_work = (jnp.pad(x_ncs, ((0, 0), (0, 0), (0, S_pad - S)))
              if S_pad != S else x_ncs)
    n_s = S_pad // tS
    acc_cols = 128 if (tS % 128 == 0 and tS // 128 <= 64) else 1

    # pass 1: global average pool -> gate (N, C, 1)
    pass1_need = 2 * C * tS * xbytes + C * tS * 4 + (1 << 20)
    gate = pl.pallas_call(
        functools.partial(_pool_gate_kernel, inv_s=inv_s),
        out_shape=jax.ShapeDtypeStruct((N, C, 1), jnp.float32),
        grid_spec=pltpu.PrefetchScalarGridSpec(
            num_scalar_prefetch=0,
            grid=(N, n_s),
            in_specs=[
                pl.BlockSpec((None, C, tS), lambda n, s: (n, 0, s)),
                pl.BlockSpec((C, B), lambda n, s: (0, 0)),
                pl.BlockSpec((1, B), lambda n, s: (0, 0)),
                pl.BlockSpec((C, B), lambda n, s: (0, 0)),
                pl.BlockSpec((C, 1), lambda n, s: (0, 0)),
            ],
            out_specs=pl.BlockSpec((None, C, 1), lambda n, s: (n, 0, 0)),
            scratch_shapes=[pltpu.VMEM((C, acc_cols), jnp.float32)],
        ),
        compiler_params=pltpu.CompilerParams(
            dimension_semantics=("parallel", "arbitrary"),
            vmem_limit_bytes=_vmem_limit(pass1_need, cap)),
    )(x_work, w1f, b1_row, w2t, b2_col)

    # pass 2: out = x * gate (streaming, fully parallel)
    pass2_need = 4 * C * tS * xbytes + C * tS * 4 + (1 << 20)
    out_work = pl.pallas_call(
        _scale_kernel,
        out_shape=jax.ShapeDtypeStruct((N, C, S_pad), x_ncs.dtype),
        grid_spec=pltpu.PrefetchScalarGridSpec(
            num_scalar_prefetch=0,
            grid=(N, n_s),
            in_specs=[
                pl.BlockSpec((None, C, tS), lambda n, s: (n, 0, s)),
                pl.BlockSpec((None, C, 1), lambda n, s: (n, 0, 0)),
            ],
            out_specs=pl.BlockSpec((None, C, tS), lambda n, s: (n, 0, s)),
        ),
        compiler_params=pltpu.CompilerParams(
            dimension_semantics=("parallel", "parallel"),
            vmem_limit_bytes=_vmem_limit(pass2_need, cap)),
        input_output_aliases=alias,
    )(x_work, gate)

    out_ncs = out_work[:, :, :S] if S_pad != S else out_work
    return out_ncs.reshape(N, C, T, H, W)


def _reference(x_ncthw, w1, b1, w2, b2):
    pooled = jnp.mean(x_ncthw, axis=(2, 3, 4))                 # (N, C)
    h = jnp.maximum(pooled @ w1 + b1, 0.0)                     # (N, B)
    gate = jax.nn.sigmoid(h @ w2 + b2)                         # (N, C)
    return x_ncthw * gate[:, :, None, None, None]


if __name__ == "__main__":
    # Small shapes consistent with the module: channels=16, reduction=0.5.
    channels, reduction = 16, 0.5
    bottleneck = _round_width(channels, reduction)             # -> 8
    N, C, T, H, W = 2, channels, 4, 8, 16                      # S = 512

    key = jax.random.PRNGKey(0)
    kx, k1, kb1, k2, kb2 = jax.random.split(key, 5)

    x = jax.random.normal(kx, (N, C, T, H, W), dtype=jnp.float32)

    # Deterministic parameter init (Conv3d kernel_size=1 -> plain matmul weights).
    fan1 = C
    w1 = jax.random.uniform(k1, (C, bottleneck), jnp.float32,
                            -1.0 / math.sqrt(fan1), 1.0 / math.sqrt(fan1))
    b1 = jax.random.uniform(kb1, (bottleneck,), jnp.float32,
                            -1.0 / math.sqrt(fan1), 1.0 / math.sqrt(fan1))
    fan2 = bottleneck
    w2 = jax.random.uniform(k2, (bottleneck, C), jnp.float32,
                            -1.0 / math.sqrt(fan2), 1.0 / math.sqrt(fan2))
    b2 = jax.random.uniform(kb2, (C,), jnp.float32,
                            -1.0 / math.sqrt(fan2), 1.0 / math.sqrt(fan2))

    ref = _reference(x, w1, b1, w2, b2)

    # Fast path: fused single-read/single-write kernel (slab easily fits VMEM).
    out_fused = jax.block_until_ready(se_module_forward(x, w1, b1, w2, b2))
    assert out_fused.shape == x.shape
    assert jnp.allclose(out_fused, ref, atol=1e-5, rtol=1e-5)

    # Fallback path: force the two-pass streaming kernels with small tiles to
    # exercise the accumulate-then-finalize pooling, the lane-dense (C, 128)
    # accumulator and the broadcast-scale pass (tS = 256 -> 2 S-tiles).
    out_two = jax.block_until_ready(
        se_module_forward(x, w1, b1, w2, b2,
                          force_two_pass=True, target_step_bytes=16 << 10))
    assert out_two.shape == x.shape
    assert jnp.allclose(out_two, ref, atol=1e-5, rtol=1e-5)

    print("KERNEL_OK")
</pallas_src>

<mosaic_0001>
module attributes {stable_mosaic.version = 11 : i64} {
  func.func @_fused_se_kernel(%arg0: i32, %arg1: memref<2x16x512xf32, #tpu.memory_space<vmem>>, %arg2: memref<16x8xf32, #tpu.memory_space<vmem>>, %arg3: memref<1x8xf32, #tpu.memory_space<vmem>>, %arg4: memref<16x8xf32, #tpu.memory_space<vmem>>, %arg5: memref<16x1xf32, #tpu.memory_space<vmem>>, %arg6: memref<2x16x512xf32, #tpu.memory_space<vmem>>) attributes {dimension_semantics = [#tpu.dimension_semantics<parallel>], iteration_bounds = array<i64: 1>, scalar_prefetch = 0 : i64, scratch_operands = 0 : i64, tpu.core_type = #tpu.core_type<tc>, window_params = [{transform_indices = @transform_0, window_bounds = array<i64: 2, 16, 512>}, {pipeline_mode = #tpu.pipeline_mode<synchronous>, transform_indices = @transform_1, window_bounds = array<i64: 16, 8>}, {pipeline_mode = #tpu.pipeline_mode<synchronous>, transform_indices = @transform_2, window_bounds = array<i64: 1, 8>}, {pipeline_mode = #tpu.pipeline_mode<synchronous>, transform_indices = @transform_3, window_bounds = array<i64: 16, 8>}, {pipeline_mode = #tpu.pipeline_mode<synchronous>, transform_indices = @transform_4, window_bounds = array<i64: 16, 1>}, {transform_indices = @transform_5, window_bounds = array<i64: 2, 16, 512>}]} {
    %c0 = arith.constant 0 : index
    %c0_0 = arith.constant 0 : index
    %c0_1 = arith.constant 0 : index
    %0 = vector.load %arg1[%c0, %c0_0, %c0_1] : memref<2x16x512xf32, #tpu.memory_space<vmem>>, vector<2x16x512xf32>
    %cst = arith.constant dense<0.000000e+00> : vector<2x16xf32>
    %1 = vector.multi_reduction <add>, %0, %cst [2] : vector<2x16x512xf32> to vector<2x16xf32>
    %2 = vector.shape_cast %1 : vector<2x16xf32> to vector<2x16x1xf32>
    %cst_2 = arith.constant 0.001953125 : f32
    %3 = vector.broadcast %cst_2 : f32 to vector<2x16x1xf32>
    %4 = arith.mulf %2, %3 : vector<2x16x1xf32>
    %c0_3 = arith.constant 0 : index
    %c0_4 = arith.constant 0 : index
    %5 = vector.load %arg2[%c0_3, %c0_4] : memref<16x8xf32, #tpu.memory_space<vmem>>, vector<16x8xf32>
    %6 = vector.shape_cast %5 : vector<16x8xf32> to vector<1x16x8xf32>
    %7 = vector.broadcast %6 : vector<1x16x8xf32> to vector<2x16x8xf32>
    %8 = vector.broadcast %4 : vector<2x16x1xf32> to vector<2x16x8xf32>
    %9 = arith.mulf %7, %8 : vector<2x16x8xf32>
    %cst_5 = arith.constant dense<0.000000e+00> : vector<2x8xf32>
    %10 = vector.multi_reduction <add>, %9, %cst_5 [1] : vector<2x16x8xf32> to vector<2x8xf32>
    %11 = vector.shape_cast %10 : vector<2x8xf32> to vector<2x1x8xf32>
    %c0_6 = arith.constant 0 : index
    %c0_7 = arith.constant 0 : index
    %12 = vector.load %arg3[%c0_6, %c0_7] : memref<1x8xf32, #tpu.memory_space<vmem>>, vector<1x8xf32>
    %13 = vector.shape_cast %12 : vector<1x8xf32> to vector<1x1x8xf32>
    %14 = vector.broadcast %13 : vector<1x1x8xf32> to vector<2x1x8xf32>
    %15 = arith.addf %11, %14 : vector<2x1x8xf32>
    %cst_8 = arith.constant 0.000000e+00 : f32
    %16 = vector.broadcast %cst_8 : f32 to vector<2x1x8xf32>
    %17 = arith.maximumf %15, %16 : vector<2x1x8xf32>
    %c0_9 = arith.constant 0 : index
    %c0_10 = arith.constant 0 : index
    %18 = vector.load %arg4[%c0_9, %c0_10] : memref<16x8xf32, #tpu.memory_space<vmem>>, vector<16x8xf32>
    %19 = vector.shape_cast %18 : vector<16x8xf32> to vector<1x16x8xf32>
    %20 = vector.broadcast %19 : vector<1x16x8xf32> to vector<2x16x8xf32>
    %21 = vector.broadcast %17 : vector<2x1x8xf32> to vector<2x16x8xf32>
    %22 = arith.mulf %20, %21 : vector<2x16x8xf32>
    %cst_11 = arith.constant dense<0.000000e+00> : vector<2x16xf32>
    %23 = vector.multi_reduction <add>, %22, %cst_11 [2] : vector<2x16x8xf32> to vector<2x16xf32>
    %24 = vector.shape_cast %23 : vector<2x16xf32> to vector<2x16x1xf32>
    %c0_12 = arith.constant 0 : index
    %c0_13 = arith.constant 0 : index
    %25 = vector.load %arg5[%c0_12, %c0_13] : memref<16x1xf32, #tpu.memory_space<vmem>>, vector<16x1xf32>
    %26 = vector.shape_cast %25 : vector<16x1xf32> to vector<1x16x1xf32>
    %27 = vector.broadcast %26 : vector<1x16x1xf32> to vector<2x16x1xf32>
    %28 = arith.addf %24, %27 : vector<2x16x1xf32>
    %29 = arith.negf %28 : vector<2x16x1xf32>
    %30 = math.exp %29 : vector<2x16x1xf32>
    %cst_14 = arith.constant 1.000000e+00 : f32
    %31 = vector.broadcast %cst_14 : f32 to vector<2x16x1xf32>
    %32 = arith.addf %31, %30 : vector<2x16x1xf32>
    %33 = arith.divf %31, %32 : vector<2x16x1xf32>
    %34 = vector.broadcast %33 : vector<2x16x1xf32> to vector<2x16x512xf32>
    %35 = arith.mulf %0, %34 : vector<2x16x512xf32>
    %c0_15 = arith.constant 0 : index
    %c0_16 = arith.constant 0 : index
    %c0_17 = arith.constant 0 : index
    %36 = vector.load %arg6[%c0_15, %c0_16, %c0_17] : memref<2x16x512xf32, #tpu.memory_space<vmem>>, vector<2x16x512xf32>
    tpu.vector_store %arg6[%c0_15, %c0_16, %c0_17], %35 {strides = array<i32>} : memref<2x16x512xf32, #tpu.memory_space<vmem>>, vector<2x16x512xf32>,
    return
  }
  func.func @transform_0(%arg0: i32) -> (i32, i32, i32) {
    %c0_i32 = arith.constant 0 : i32
    %c0_i32_0 = arith.constant 0 : i32
    %c0_i32_1 = arith.constant 0 : i32
    return %arg0, %c0_i32, %c0_i32_0 : i32, i32, i32
  }
  func.func @transform_1(%arg0: i32) -> (i32, i32) {
    %c0_i32 = arith.constant 0 : i32
    %c0_i32_0 = arith.constant 0 : i32
    %c0_i32_1 = arith.constant 0 : i32
    return %c0_i32, %c0_i32_0 : i32, i32
  }
  func.func @transform_2(%arg0: i32) -> (i32, i32) {
    %c0_i32 = arith.constant 0 : i32
    %c0_i32_0 = arith.constant 0 : i32
    %c0_i32_1 = arith.constant 0 : i32
    return %c0_i32, %c0_i32_0 : i32, i32
  }
  func.func @transform_3(%arg0: i32) -> (i32, i32) {
    %c0_i32 = arith.constant 0 : i32
    %c0_i32_0 = arith.constant 0 : i32
    %c0_i32_1 = arith.constant 0 : i32
    return %c0_i32, %c0_i32_0 : i32, i32
  }
  func.func @transform_4(%arg0: i32) -> (i32, i32) {
    %c0_i32 = arith.constant 0 : i32
    %c0_i32_0 = arith.constant 0 : i32
    %c0_i32_1 = arith.constant 0 : i32
    return %c0_i32, %c0_i32_0 : i32, i32
  }
  func.func @transform_5(%arg0: i32) -> (i32, i32, i32) {
    %c0_i32 = arith.constant 0 : i32
    %c0_i32_0 = arith.constant 0 : i32
    %c0_i32_1 = arith.constant 0 : i32
    return %arg0, %c0_i32, %c0_i32_0 : i32, i32, i32
  }
}

</mosaic_0001>

<llo_original>
// kernel: tpu_custom_call.1
$region0: #{tpu_custom_call.1}
  #allocation0 [shape = 'u32[]', space=smem, size = 0x4, offset = 0x4, fixed_abs, tag = 'smem constant byte address 0x4 - core index']
  #allocation1 [shape = 'u32[72,128]{1,0:T(1,128)}', space=vmem, size = 0x9000, scoped, tag = 'internal scratch']
  %s0 = inlined_call_operand.hbm [shape: f32[2,16,512], index: 0, kind: input, shape index: {}]
  %s1 = inlined_call_operand.vmem [shape: f32[16,8], index: 1, kind: input, shape index: {}]
  %s2 = inlined_call_operand.vmem [shape: f32[1,8], index: 2, kind: input, shape index: {}]
  %s3 = inlined_call_operand.vmem [shape: f32[16,8], index: 3, kind: input, shape index: {}]
  %s4 = inlined_call_operand.vmem [shape: f32[16,1], index: 4, kind: input, shape index: {}]
  %s5 = inlined_call_operand.hbm [shape: f32[2,16,512], index: 5, kind: output, shape index: {}]
  %s6 = sld [smem:[#allocation0]]
  $region34: #{tpu_custom_call.1} parent=0
    _
  %s8 = ssub.s32 1, %s6
  %s9 = scalar_select 0, %s8, %s6
  $region1: #{tpu_custom_call.1} parent=0
    #allocation2 [shape = 'u8[65536]{0}', space=vmem, size = 0x10000, scoped, tag = 'input window, operand 0, single buffered']
    #allocation3 [shape = 's32[1]{0}', space=sflag, size = 0x4, scoped, tag = 'scoped memory for tpu_custom_call.1']
    #allocation4 [shape = 's32[1]{0}', space=sflag, size = 0x4, scoped, tag = 'scoped memory for tpu_custom_call.1']
    #allocation5 [shape = 'u8[65536]{0}', space=vmem, size = 0x10000, scoped, tag = 'output window, operand 0, single buffered']
    %10 = vsyncpa [#allocation3], 0
    %11 = vsyncpa [#allocation4], 0
    // Predicated region
    $region2: #{tpu_custom_call.1} parent=1 // pred_check
      _
    $region3: #{tpu_custom_call.1} parent=1 // pred_check_branch
      %13 = sbr.rel (0) target = $region5
    $region4: #{tpu_custom_call.1} parent=1 // pred_region
      %15 = vsyncadd [#allocation3], 0
      %s16 = sshll.u32 %s0, 4
      %s17 = int_to_ptr.hbm [resolvable:$true] %s16
      %s18 = sshll.u32 [#allocation2], 4
      %s19 = int_to_ptr.vmem [resolvable:$true] %s18
      %24 = dma.hbm_to_vmem [thread:$0]  %s17, 2048, %s19, [#allocation3], 512, 512, 32
    $region5: #{tpu_custom_call.1} parent=1 // pred_fallthru
      _
    // Predicated region
    $region6: #{tpu_custom_call.1} parent=1 // pred_check
      _
    $region7: #{tpu_custom_call.1} parent=1 // pred_check_branch
      %26 = sbr.rel (0) target = $region9
    $region8: #{tpu_custom_call.1} parent=1 // pred_region
      _
    $region9: #{tpu_custom_call.1} parent=1 // pred_fallthru
      _
    // Predicated region
    $region10: #{tpu_custom_call.1} parent=1 // pred_check
      _
    $region11: #{tpu_custom_call.1} parent=1 // pred_check_branch
      %28 = sbr.rel (0) target = $region13
    $region12: #{tpu_custom_call.1} parent=1 // pred_region
      _
    $region13: #{tpu_custom_call.1} parent=1 // pred_fallthru
      _
    // Predicated region
    $region14: #{tpu_custom_call.1} parent=1 // pred_check
      _
    $region15: #{tpu_custom_call.1} parent=1 // pred_check_branch
      %30 = sbr.rel (0) target = $region17
    $region16: #{tpu_custom_call.1} parent=1 // pred_region
      _
    $region17: #{tpu_custom_call.1} parent=1 // pred_fallthru
      _
    // Predicated region
    $region18: #{tpu_custom_call.1} parent=1 // pred_check
      _
    $region19: #{tpu_custom_call.1} parent=1 // pred_check_branch
      %32 = sbr.rel (0) target = $region21
    $region20: #{tpu_custom_call.1} parent=1 // pred_region
      _
    $region21: #{tpu_custom_call.1} parent=1 // pred_fallthru
      _
    // Predicated region
    $region22: #{tpu_custom_call.1} parent=1 // pred_check
      _
    $region23: #{tpu_custom_call.1} parent=1 // pred_check_branch
      %34 = sbr.rel (0) target = $region25
    $region24: #{tpu_custom_call.1} parent=1 // pred_region
      %36 = dma.done [#allocation3], 2048
    $region25: #{tpu_custom_call.1} parent=1 // pred_fallthru
      _
    %v37 = vld [vmem:[#allocation2] sm:$0xff]
    %v38 = vld [vmem:[#allocation2 + $0x8] sm:$0xff]
    %v39 = vld [vmem:[#allocation2 + $0x10] sm:$0xff]
    %v40 = vld [vmem:[#allocation2 + $0x18] sm:$0xff]
    %v41 = vld [vmem:[#allocation2 + $0x20] sm:$0xff]
    %v42 = vld [vmem:[#allocation2 + $0x28] sm:$0xff]
    %v43 = vld [vmem:[#allocation2 + $0x30] sm:$0xff]
    %v44 = vld [vmem:[#allocation2 + $0x38] sm:$0xff]
    %v45 = vld [vmem:[#allocation2 + $0x40] sm:$0xff]
    %v46 = vld [vmem:[#allocation2 + $0x48] sm:$0xff]
    %v47 = vld [vmem:[#allocation2 + $0x50] sm:$0xff]
    %v48 = vld [vmem:[#allocation2 + $0x58] sm:$0xff]
    %v49 = vld [vmem:[#allocation2 + $0x60] sm:$0xff]
    %v50 = vld [vmem:[#allocation2 + $0x68] sm:$0xff]
    %v51 = vld [vmem:[#allocation2 + $0x70] sm:$0xff]
    %v52 = vld [vmem:[#allocation2 + $0x78] sm:$0xff]
    %v53 = vadd.f32 %v37, %v38
    %v54 = vadd.f32 %v53, %v39
    %v55 = vadd.f32 %v54, %v40
    %56 = vadd.xlane.f32.xlu0 %v55
    %v57 = vpop.xlane.xlu0 %56
    %v58 = vadd.f32 %v41, %v42
    %v59 = vadd.f32 %v58, %v43
    %v60 = vadd.f32 %v59, %v44
    %61 = vadd.xlane.f32.xlu0 %v60
    %v62 = vpop.xlane.xlu0 %61
    %v63 = vadd.f32 %v45, %v46
    %v64 = vadd.f32 %v63, %v47
    %v65 = vadd.f32 %v64, %v48
    %66 = vadd.xlane.f32.xlu0 %v65
    %v67 = vpop.xlane.xlu0 %66
    %v68 = vadd.f32 %v49, %v50
    %v69 = vadd.f32 %v68, %v51
    %v70 = vadd.f32 %v69, %v52
    %71 = vadd.xlane.f32.xlu0 %v70
    %v72 = vpop.xlane.xlu0 %71
    %v73 = vmul.f32 %v57, 0.001953125
    %v74 = vmul.f32 %v62, 0.001953125
    %v75 = vmul.f32 %v67, 0.001953125
    %v76 = vmul.f32 %v72, 0.001953125
    %v77 = vld [vmem:[%s1] sm:$0xff]
    %v78 = vld [vmem:[%s1 + $0x8] sm:$0xff]
    %v79 = vmul.f32 %v77, %v73
    %v80 = vmul.f32 %v78, %v74
    %v81 = vmul.f32 %v77, %v75
    %v82 = vmul.f32 %v78, %v76
    %vm83 = vcmask 64512
    %v84 = vsel %vm83, %v79, 0.0
    %v85 = vsel %vm83, %v80, 0.0
    %v86 = vadd.f32 %v84, %v85
    %v87 = vrot.slane %v86, 4
    %v88 = vadd.f32 %v86, %v87
    %v89 = vrot.slane %v88, 2
    %v90 = vadd.f32 %v88, %v89
    %v91 = vrot.slane %v90, 1
    %v92 = vadd.f32 %v90, %v91
    %v93 = vsel %vm83, %v81, 0.0
    %v94 = vsel %vm83, %v82, 0.0
    %v95 = vadd.f32 %v93, %v94
    %v96 = vrot.slane %v95, 4
    %v97 = vadd.f32 %v95, %v96
    %v98 = vrot.slane %v97, 2
    %v99 = vadd.f32 %v97, %v98
    %v100 = vrot.slane %v99, 1
    %v101 = vadd.f32 %v99, %v100
    %v102 = vld [vmem:[%s2] sm:$0x1]
    %v103 = vadd.f32 %v92, %v102
    %v104 = vadd.f32 %v101, %v102
    %v105 = vmax.f32 %v103, 0.0
    %v106 = vmax.f32 %v104, 0.0
    %v107 = vld [vmem:[%s3] sm:$0xff]
    %v108 = vld [vmem:[%s3 + $0x8] sm:$0xff]
    %v109 = vperm.slane %v105, 0
    %v110 = vperm.slane %v106, 0
    %v111 = vmul.f32 %v107, %v109
    %v112 = vmul.f32 %v108, %v109
    %v113 = vmul.f32 %v107, %v110
    %v114 = vmul.f32 %v108, %v110
    %v115 = vsel %vm83, %v111, 0.0
    %116 = vadd.xlane.f32.xlu0 %v115
    %v117 = vpop.xlane.xlu0 %116
    %v118 = vsel %vm83, %v112, 0.0
    %119 = vadd.xlane.f32.xlu0 %v118
    %v120 = vpop.xlane.xlu0 %119
    %v121 = vsel %vm83, %v113, 0.0
    %122 = vadd.xlane.f32.xlu0 %v121
    %v123 = vpop.xlane.xlu0 %122
    %v124 = vsel %vm83, %v114, 0.0
    %125 = vadd.xlane.f32.xlu0 %v124
    %v126 = vpop.xlane.xlu0 %125
    %v127 = vld [vmem:[%s4] sm:$0xff]
    %v128 = vld [vmem:[%s4 + $0x8] sm:$0xff]
    %v129 = vadd.f32 %v117, %v127
    %v130 = vadd.f32 %v120, %v128
    %v131 = vadd.f32 %v123, %v127
    %v132 = vadd.f32 %v126, %v128
    %v133 = vxor.u32 %v129, 2147483648
    %v134 = vxor.u32 %v130, 2147483648
    %v135 = vxor.u32 %v131, 2147483648
    %v136 = vxor.u32 %v132, 2147483648
    %v137 = vmul.f32 %v133, 1.442695
    %v138 = vpow.pop %v137
    %v139 = vmul.f32 %v134, 1.442695
    %v140 = vpow.pop %v139
    %v141 = vmul.f32 %v135, 1.442695
    %v142 = vpow.pop %v141
    %v143 = vmul.f32 %v136, 1.442695
    %v144 = vpow.pop %v143
    %v145 = vadd.f32 %v138, 1.0
    %v146 = vadd.f32 %v140, 1.0
    %v147 = vadd.f32 %v142, 1.0
    %v148 = vadd.f32 %v144, 1.0
    %v149 = vrcp.pop %v145
    %v150 = vmul.f32 %v145, %v149
    %v151 = vsub.f32 1.0, %v150
    %v152 = vmul.f32 %v149, %v151
    %v153 = vadd.f32 %v149, %v152
    %vm154 = vweird.f32 %v145
    %vm155 = vweird.f32 %v149
    %vm156 = vmor %vm154, %vm155
    %v157 = vsel %vm156, %v149, %v153
    %v158 = vand.u32 2147483647, %v145
    %vm159 = vcmp.eq.f32.partialorder %v158, 8.507059e+37
    %v160 = vand.u32 %v145, 2147483648
    %v161 = vor.u32 1.1754944e-38, %v160
    %v162 = vsel %vm159, %v161, %v157
    %v163 = vmul.f32 1.0, %v162
    %v164 = vrcp.pop %v146
    %v165 = vmul.f32 %v146, %v164
    %v166 = vsub.f32 1.0, %v165
    %v167 = vmul.f32 %v164, %v166
    %v168 = vadd.f32 %v164, %v167
    %vm169 = vweird.f32 %v146
    %vm170 = vweird.f32 %v164
    %vm171 = vmor %vm169, %vm170
    %v172 = vsel %vm171, %v164, %v168
    %v173 = vand.u32 2147483647, %v146
    %vm174 = vcmp.eq.f32.partialorder %v173, 8.507059e+37
    %v175 = vand.u32 %v146, 2147483648
    %v176 = vor.u32 1.1754944e-38, %v175
    %v177 = vsel %vm174, %v176, %v172
    %v178 = vmul.f32 1.0, %v177
    %v179 = vrcp.pop %v147
    %v180 = vmul.f32 %v147, %v179
    %v181 = vsub.f32 1.0, %v180
    %v182 = vmul.f32 %v179, %v181
    %v183 = vadd.f32 %v179, %v182
    %vm184 = vweird.f32 %v147
    %vm185 = vweird.f32 %v179
    %vm186 = vmor %vm184, %vm185
    %v187 = vsel %vm186, %v179, %v183
    %v188 = vand.u32 2147483647, %v147
    %vm189 = vcmp.eq.f32.partialorder %v188, 8.507059e+37
    %v190 = vand.u32 %v147, 2147483648
    %v191 = vor.u32 1.1754944e-38, %v190
    %v192 = vsel %vm189, %v191, %v187
    %v193 = vmul.f32 1.0, %v192
    %v194 = vrcp.pop %v148
    %v195 = vmul.f32 %v148, %v194
    %v196 = vsub.f32 1.0, %v195
    %v197 = vmul.f32 %v194, %v196
    %v198 = vadd.f32 %v194, %v197
    %vm199 = vweird.f32 %v148
    %vm200 = vweird.f32 %v194
    %vm201 = vmor %vm199, %vm200
    %v202 = vsel %vm201, %v194, %v198
    %v203 = vand.u32 2147483647, %v148
    %vm204 = vcmp.eq.f32.partialorder %v203, 8.507059e+37
    %v205 = vand.u32 %v148, 2147483648
    %v206 = vor.u32 1.1754944e-38, %v205
    %v207 = vsel %vm204, %v206, %v202
    %v208 = vmul.f32 1.0, %v207
    %210 = vset.pattern.permute.xlu0 0
    %211 = vperm.xlu0 %210, %v163
    %v212 = vpop.permute.xlu0 %211
    %215 = vset.pattern.permute.xlu0 0
    %216 = vperm.xlu0 %215, %v178
    %v217 = vpop.permute.xlu0 %216
    %220 = vset.pattern.permute.xlu0 0
    %221 = vperm.xlu0 %220, %v193
    %v222 = vpop.permute.xlu0 %221
    %225 = vset.pattern.permute.xlu0 0
    %226 = vperm.xlu0 %225, %v208
    %v227 = vpop.permute.xlu0 %226
    %v229 = vmul.f32 %v37, %v212
    %v230 = vmul.f32 %v38, %v212
    %v231 = vmul.f32 %v39, %v212
    %v232 = vmul.f32 %v40, %v212
    %v233 = vmul.f32 %v41, %v217
    %v234 = vmul.f32 %v42, %v217
    %v235 = vmul.f32 %v43, %v217
    %v236 = vmul.f32 %v44, %v217
    %v237 = vmul.f32 %v45, %v222
    %v238 = vmul.f32 %v46, %v222
    %v239 = vmul.f32 %v47, %v222
    %v240 = vmul.f32 %v48, %v222
    %v241 = vmul.f32 %v49, %v227
    %v242 = vmul.f32 %v50, %v227
    %v243 = vmul.f32 %v51, %v227
    %v244 = vmul.f32 %v52, %v227
    %245 = vst [vmem:[#allocation5] sm:$0xff] %v229
    %246 = vst [vmem:[#allocation5 + $0x8] sm:$0xff] %v230
    %247 = vst [vmem:[#allocation5 + $0x10] sm:$0xff] %v231
    %248 = vst [vmem:[#allocation5 + $0x18] sm:$0xff] %v232
    %249 = vst [vmem:[#allocation5 + $0x20] sm:$0xff] %v233
    %250 = vst [vmem:[#allocation5 + $0x28] sm:$0xff] %v234
    %251 = vst [vmem:[#allocation5 + $0x30] sm:$0xff] %v235
    %252 = vst [vmem:[#allocation5 + $0x38] sm:$0xff] %v236
    %253 = vst [vmem:[#allocation5 + $0x40] sm:$0xff] %v237
    %254 = vst [vmem:[#allocation5 + $0x48] sm:$0xff] %v238
    %255 = vst [vmem:[#allocation5 + $0x50] sm:$0xff] %v239
    %256 = vst [vmem:[#allocation5 + $0x58] sm:$0xff] %v240
    %257 = vst [vmem:[#allocation5 + $0x60] sm:$0xff] %v241
    %258 = vst [vmem:[#allocation5 + $0x68] sm:$0xff] %v242
    %259 = vst [vmem:[#allocation5 + $0x70] sm:$0xff] %v243
    %260 = vst [vmem:[#allocation5 + $0x78] sm:$0xff] %v244
    // Predicated region
    $region26: #{tpu_custom_call.1} parent=1 // pred_check
      _
    $region27: #{tpu_custom_call.1} parent=1 // pred_check_branch
      %262 = sbr.rel (0) target = $region29
    $region28: #{tpu_custom_call.1} parent=1 // pred_region
      %264 = vsyncadd [#allocation4], 0
      %s265 = sshll.u32 [#allocation5], 4
      %s266 = int_to_ptr.vmem [resolvable:$true] %s265
      %s267 = sshll.u32 %s5, 4
      %s268 = int_to_ptr.hbm [resolvable:$true] %s267
      %273 = dma.vmem_to_hbm [thread:$0]  %s266, 2048, %s268, [#allocation4], 512, 512, 32
    $region29: #{tpu_custom_call.1} parent=1 // pred_fallthru
      _
    // Predicated region
    $region30: #{tpu_custom_call.1} parent=1 // pred_check
      _
    $region31: #{tpu_custom_call.1} parent=1 // pred_check_branch
      %275 = sbr.rel (0) target = $region33
    $region32: #{tpu_custom_call.1} parent=1 // pred_region
      %277 = dma.done [#allocation4], 2048
    $region33: #{tpu_custom_call.1} parent=1 // pred_fallthru
      _
    %278 = vsyncpa [#allocation3], 1
    %279 = vsyncpa [#allocation4], 1

</llo_original>
